<compile_context>
chip_gen: v7x
topology: tpu7x:2x2x1
jax: 0.10.0
libtpu: 0.0.40
codegen_flags: <defaults>
</compile_context>

<pallas_src>
import numpy as np
import jax
import jax.numpy as jnp
from jax.experimental import pallas as pl
from jax.experimental.pallas import tpu as pltpu


# ---------------------------------------------------------------------------
# Pallas kernel: identity copy (the only tensor computation in forward())
# ---------------------------------------------------------------------------
def _copy_kernel(x_ref, o_ref):
    o_ref[...] = x_ref[...]


def _pick_lane_dense_layout(total_elems: int, itemsize: int):
    """Choose a (rows, width) 2D view with a lane-dense width (multiple of 128)
    and a block row count giving ~4 MiB tiles.

    Returns (rows, width, block_rows) or None if no lane-dense factorization
    exists (caller falls back to a single whole-array block).
    """
    for width in (4096, 2048, 1024, 512, 256, 128):
        if total_elems % width == 0:
            break
    else:
        return None
    rows = total_elems // width

    # ~4 MiB per block -> ~16 MiB live with double-buffered input + output,
    # comfortably under the 32 MiB scoped-VMEM default on v5e / v6e / v7x.
    max_block_rows = max(1, (4 * 1024 * 1024) // (width * itemsize))
    if rows <= max_block_rows:
        # Block equals the full array dims -> always a legal BlockSpec.
        return rows, width, rows

    # Largest divisor of rows that fits the byte budget and respects the
    # (8, 128) sublane rule (multiple of 8, or the full extent).
    for cand in range(min(rows, max_block_rows), 0, -1):
        if rows % cand == 0 and (cand % 8 == 0 or cand == rows):
            return rows, width, cand
    return None


def custom_roi_forward(x: jax.Array, *, in_place: bool = False) -> jax.Array:
    """Pallas implementation of CustomROI.forward (identity on x)."""
    orig_shape = x.shape
    total = int(np.prod(orig_shape)) if len(orig_shape) else 1
    itemsize = jnp.dtype(x.dtype).itemsize
    alias = {0: 0} if in_place else {}

    layout = _pick_lane_dense_layout(total, itemsize)
    if layout is None:
        # Fallback for shapes whose element count is not a multiple of 128:
        # single whole-array block (legal because block == full dims).
        return pl.pallas_call(
            _copy_kernel,
            out_shape=jax.ShapeDtypeStruct(orig_shape, x.dtype),
            input_output_aliases=alias,
        )(x)

    rows, width, block_rows = layout
    x2d = x.reshape(rows, width)  # contiguous flatten: layout-only, no compute

    out2d = pl.pallas_call(
        _copy_kernel,
        out_shape=jax.ShapeDtypeStruct((rows, width), x.dtype),
        grid=(rows // block_rows,),
        in_specs=[pl.BlockSpec((block_rows, width), lambda i: (i, 0))],
        out_specs=pl.BlockSpec((block_rows, width), lambda i: (i, 0)),
        compiler_params=pltpu.CompilerParams(
            dimension_semantics=("parallel",)),
        input_output_aliases=alias,
    )(x2d)
    return out2d.reshape(orig_shape)


# ---------------------------------------------------------------------------
# Module wrapper mirroring the PyTorch CustomROI
# ---------------------------------------------------------------------------
class CustomROI:
    def __init__(self, x: int, y: int, size: int = 8):
        # Deterministic, parameter-free construction (no weights in the module).
        self.anchors = np.array([[1.0, 1.0], [2.0 / 3.0, 4.0 / 3.0], [4.0 / 3.0, 2.0 / 3.0]])
        self.scales = np.array([0.5, 0.25, 0.125])
        # Kept as a list because the per-scale proposal arrays are ragged
        # (original code's np.array(...) over ragged shapes is a numpy
        # deprecation; semantics are identical for the forward pass).
        self.ROI = [self.region_proposal(y, x, s) for s in self.scales]

    def region_proposal(self, height: int, width: int, scale: float) -> np.ndarray:
        a = []
        for anchor in self.anchors:
            a.append(anchor * scale * np.array([width, height]))
        a = np.array(a)  # (3, 2)
        b = []
        for xx in range(0, width, int(1 / scale)):
            for yy in range(0, height, int(1 / scale)):
                b.append(a + np.array([xx, yy]))
        return np.array(b)  # (num_positions, 3, 2)

    def forward(self, x: jax.Array) -> jax.Array:
        scores = []  # noqa: F841  (unused, as in the reference module)
        boxes = []   # noqa: F841
        for box in self.ROI:
            pass  # reference forward does no work per ROI
        # TODO(synk): reference forward never scores/clips the ROI boxes; only
        # the identity on x is tensor compute, implemented in the Pallas kernel.
        return custom_roi_forward(x)

    def __call__(self, x):
        return self.forward(x)


# ---------------------------------------------------------------------------
# Demo / smoke test
# ---------------------------------------------------------------------------
if __name__ == "__main__":
    key = jax.random.PRNGKey(0)
    N, C, H, W = 2, 4, 16, 16
    x = jax.random.normal(key, (N, C, H, W), dtype=jnp.float32)

    module = CustomROI(x=W, y=H, size=8)

    out = module(x)
    out = jax.block_until_ready(out)

    assert out.shape == (N, C, H, W)
    assert out.dtype == x.dtype
    np.testing.assert_allclose(np.asarray(out), np.asarray(x), rtol=0, atol=0)

    print("KERNEL_OK")
</pallas_src>

<mosaic_0001>
module attributes {stable_mosaic.version = 11 : i64} {
  func.func @_copy_kernel(%arg0: i32, %arg1: memref<1x2048xf32, #tpu.memory_space<vmem>>, %arg2: memref<1x2048xf32, #tpu.memory_space<vmem>>) attributes {dimension_semantics = [#tpu.dimension_semantics<parallel>], iteration_bounds = array<i64: 1>, scalar_prefetch = 0 : i64, scratch_operands = 0 : i64, tpu.core_type = #tpu.core_type<tc>, window_params = [{transform_indices = @transform_0, window_bounds = array<i64: 1, 2048>}, {transform_indices = @transform_1, window_bounds = array<i64: 1, 2048>}]} {
    %c0 = arith.constant 0 : index
    %c0_0 = arith.constant 0 : index
    %0 = vector.load %arg1[%c0, %c0_0] : memref<1x2048xf32, #tpu.memory_space<vmem>>, vector<1x2048xf32>
    %c0_1 = arith.constant 0 : index
    %c0_2 = arith.constant 0 : index
    %1 = vector.load %arg2[%c0_1, %c0_2] : memref<1x2048xf32, #tpu.memory_space<vmem>>, vector<1x2048xf32>
    tpu.vector_store %arg2[%c0_1, %c0_2], %0 {strides = array<i32>} : memref<1x2048xf32, #tpu.memory_space<vmem>>, vector<1x2048xf32>,
    return
  }
  func.func @transform_0(%arg0: i32) -> (i32, i32) {
    %c0_i32 = arith.constant 0 : i32
    %c0_i32_0 = arith.constant 0 : i32
    return %arg0, %c0_i32 : i32, i32
  }
  func.func @transform_1(%arg0: i32) -> (i32, i32) {
    %c0_i32 = arith.constant 0 : i32
    %c0_i32_0 = arith.constant 0 : i32
    return %arg0, %c0_i32 : i32, i32
  }
}

</mosaic_0001>

<llo_original>
// kernel: tpu_custom_call.1
$region0: #{tpu_custom_call.1}
  #allocation0 [shape = 'u32[]', space=smem, size = 0x4, offset = 0x4, fixed_abs, tag = 'smem constant byte address 0x4 - core index']
  #allocation1 [shape = 'u32[144,128]{1,0:T(1,128)}', space=vmem, size = 0x12000, scoped, tag = 'internal scratch']
  %s0 = inlined_call_operand.hbm [shape: f32[1,2048], index: 0, kind: input, shape index: {}]
  %s1 = inlined_call_operand.hbm [shape: f32[1,2048], index: 1, kind: output, shape index: {}]
  %s2 = sld [smem:[#allocation0]]
  $region18: #{tpu_custom_call.1} parent=0
    _
  %s4 = ssub.s32 1, %s2
  %s5 = scalar_select 0, %s4, %s2
  $region1: #{tpu_custom_call.1} parent=0
    #allocation2 [shape = 'u8[8192]{0}', space=vmem, size = 0x2000, scoped, tag = 'input window, operand 0, single buffered']
    #allocation3 [shape = 's32[1]{0}', space=sflag, size = 0x4, scoped, tag = 'scoped memory for tpu_custom_call.1']
    #allocation4 [shape = 's32[1]{0}', space=sflag, size = 0x4, scoped, tag = 'scoped memory for tpu_custom_call.1']
    #allocation5 [shape = 'u8[8192]{0}', space=vmem, size = 0x2000, scoped, tag = 'output window, operand 0, single buffered']
    %6 = vsyncpa [#allocation3], 0
    %7 = vsyncpa [#allocation4], 0
    // Predicated region
    $region2: #{tpu_custom_call.1} parent=1 // pred_check
      _
    $region3: #{tpu_custom_call.1} parent=1 // pred_check_branch
      %9 = sbr.rel (0) target = $region5
    $region4: #{tpu_custom_call.1} parent=1 // pred_region
      %s11 = ssub.s32 256, 256
      %12 = vsyncadd [#allocation3], %s11
      %s14 = sshll.u32 [#allocation2], 4
      %s15 = int_to_ptr.vmem [resolvable:$true] %s14
      %17 = dma.hbm_to_vmem [thread:$0]  %s0, 256, %s15, [#allocation3]
    $region5: #{tpu_custom_call.1} parent=1 // pred_fallthru
      _
    // Predicated region
    $region6: #{tpu_custom_call.1} parent=1 // pred_check
      _
    $region7: #{tpu_custom_call.1} parent=1 // pred_check_branch
      %19 = sbr.rel (0) target = $region9
    $region8: #{tpu_custom_call.1} parent=1 // pred_region
      %20 = dma.done [#allocation3], 256
    $region9: #{tpu_custom_call.1} parent=1 // pred_fallthru
      _
    %v21 = vld [vmem:[#allocation2] sm:$0xff]
    %v22 = vld [vmem:[#allocation2 + $0x8] sm:$0xff]
    %23 = vst [vmem:[#allocation5] sm:$0xff] %v21
    %24 = vst [vmem:[#allocation5 + $0x8] sm:$0xff] %v22
    // Predicated region
    $region10: #{tpu_custom_call.1} parent=1 // pred_check
      _
    $region11: #{tpu_custom_call.1} parent=1 // pred_check_branch
      %26 = sbr.rel (0) target = $region13
    $region12: #{tpu_custom_call.1} parent=1 // pred_region
      %s28 = ssub.s32 256, 256
      %29 = vsyncadd [#allocation4], %s28
      %s31 = sshll.u32 [#allocation5], 4
      %s32 = int_to_ptr.vmem [resolvable:$true] %s31
      %34 = dma.vmem_to_hbm [thread:$0]  %s32, 256, %s1, [#allocation4]
    $region13: #{tpu_custom_call.1} parent=1 // pred_fallthru
      _
    // Predicated region
    $region14: #{tpu_custom_call.1} parent=1 // pred_check
      _
    $region15: #{tpu_custom_call.1} parent=1 // pred_check_branch
      %36 = sbr.rel (0) target = $region17
    $region16: #{tpu_custom_call.1} parent=1 // pred_region
      %37 = dma.done [#allocation4], 256
    $region17: #{tpu_custom_call.1} parent=1 // pred_fallthru
      _
    %38 = vsyncpa [#allocation3], 1
    %39 = vsyncpa [#allocation4], 1

</llo_original>
